<compile_context>
chip_gen: v6e
topology: v6e:2x2x1
jax: 0.10.0
libtpu: 0.0.40
codegen_flags: <defaults>
</compile_context>

<pallas_src>
import jax
import jax.numpy as jnp
from jax.experimental import pallas as pl
from jax.experimental.pallas import tpu as pltpu

LANES = 128          # vreg lane width
SUBLANES = 8         # f32 sublane tiling (if this path ever takes bf16, use 16)


def _logreg_kernel(x_ref, wb_ref, o_ref):
    # x_ref: (block_rows, 128) f32 tile in VMEM (lane-dense view of flattened input)
    # wb_ref: (2,) f32 in SMEM -> [weight, bias] read as scalars
    w = wb_ref[0]
    b = wb_ref[1]
    z = x_ref[...] * w + b
    # sigmoid(z) == 0.5 * tanh(0.5 * z) + 0.5 : a single EUP transcendental,
    # exact, and with no overflow for very negative z.  VPU mul/add are filler
    # under the HBM-bound DMA stream.
    o_ref[...] = (0.5 * jnp.tanh(0.5 * z) + 0.5).astype(o_ref.dtype)


def logistic_regression(x, weight, bias, *, max_block_rows=8192, min_pallas_elems=1 << 18):
    """Forward of Linear(1,1) + sigmoid.  x: [N, 1] float32 -> [N, 1]."""
    n = x.size
    dtype = x.dtype
    w = weight.reshape(()).astype(dtype)
    b = bias.reshape(()).astype(dtype)

    # Small inputs: kernel launch / DMA ramp dominates — let XLA fuse it.
    if n < min_pallas_elems:
        return jax.nn.sigmoid(x * w + b)

    # Lane-dense layout: flatten and pad only to a single (8,128) f32 tile
    # (<= 4 KiB of pad), NOT to a whole block.  For tile-aligned sizes (like
    # the test's 1M elements) this is a pure metadata reshape: no extra HBM
    # read/write from jnp.pad or a trailing slice.
    tile_elems = SUBLANES * LANES
    padded = pl.cdiv(n, tile_elems) * tile_elems
    flat = x.reshape(-1)
    if padded != n:
        flat = jnp.pad(flat, (0, padded - n))
    rows = padded // LANES                    # multiple of 8 by construction
    x2d = flat.reshape(rows, LANES)

    # Adaptive block size: target >= 8 grid steps so v7x's two TensorCores each
    # get >= 4 steps and double-buffering reaches steady state, capped at
    # 8192 rows (4 MiB block -> 16 MiB double-buffered in+out).
    target = (rows // 8) & ~(SUBLANES - 1)    # multiple of 8
    block_rows = max(SUBLANES, min(max_block_rows, max(512, target), rows))
    grid = pl.cdiv(rows, block_rows)          # ragged final block handled by Pallas

    wb = jnp.stack([w, b])                    # (2,) -> SMEM scalars

    out2d = pl.pallas_call(
        _logreg_kernel,
        out_shape=jax.ShapeDtypeStruct((rows, LANES), dtype),
        grid_spec=pltpu.PrefetchScalarGridSpec(
            num_scalar_prefetch=0,
            grid=(grid,),
            in_specs=[
                pl.BlockSpec((block_rows, LANES), lambda i: (i, 0)),
                pl.BlockSpec(memory_space=pltpu.MemorySpace.SMEM),
            ],
            out_specs=pl.BlockSpec((block_rows, LANES), lambda i: (i, 0)),
        ),
        compiler_params=pltpu.CompilerParams(
            # Independent row tiles -> shard across both TensorCores on v7x.
            dimension_semantics=("parallel",),
            # 4 MiB blocks double-buffered for in+out = 16 MiB; raise v5e's
            # 16 MiB default so it fits there too, stays within v7x's 64 MiB
            # physical VMEM.
            vmem_limit_bytes=32 * 1024 * 1024,
        ),
    )(x2d, wb)

    flat_out = out2d.reshape(-1)
    if padded != n:
        flat_out = flat_out[:n]
    return flat_out.reshape(x.shape)


if __name__ == "__main__":
    key = jax.random.PRNGKey(0)
    kx, kw, kb, kx2 = jax.random.split(key, 4)

    # Deterministic Linear(1,1) parameters (PyTorch default init with fan_in=1: U(-1,1)).
    weight = jax.random.uniform(kw, (1, 1), minval=-1.0, maxval=1.0, dtype=jnp.float32)
    bias = jax.random.uniform(kb, (1,), minval=-1.0, maxval=1.0, dtype=jnp.float32)

    # Small input consistent with the module (batch=8, in_features=1): fused XLA path.
    x_small = jax.random.normal(kx, (8, 1), dtype=jnp.float32)
    y_small = logistic_regression(x_small, weight, bias)
    jax.block_until_ready(y_small)
    ref_small = jax.nn.sigmoid(x_small @ weight.T + bias)
    assert y_small.shape == x_small.shape
    assert jnp.allclose(y_small, ref_small, atol=1e-6), "small-path mismatch vs reference"

    # Larger batch exercises the lane-dense, row-tiled Pallas kernel (8 grid steps).
    x_big = jax.random.normal(kx2, (1 << 20, 1), dtype=jnp.float32)
    y_big = logistic_regression(x_big, weight, bias)
    jax.block_until_ready(y_big)
    ref_big = jax.nn.sigmoid(x_big @ weight.T + bias)
    assert y_big.shape == x_big.shape
    # Exact tanh-form sigmoid: only f32 rounding differences vs jax.nn.sigmoid.
    assert jnp.allclose(y_big, ref_big, atol=1e-5), "pallas-path mismatch vs reference"

    print("KERNEL_OK")
</pallas_src>

<mosaic_0001>
module attributes {stable_mosaic.version = 11 : i64} {
  func.func @_logreg_kernel(%arg0: i32, %arg1: memref<1024x128xf32, #tpu.memory_space<vmem>>, %arg2: memref<2xf32, #tpu.memory_space<smem>>, %arg3: memref<1024x128xf32, #tpu.memory_space<vmem>>) attributes {dimension_semantics = [#tpu.dimension_semantics<parallel>], iteration_bounds = array<i64: 8>, scalar_prefetch = 0 : i64, scratch_operands = 0 : i64, tpu.core_type = #tpu.core_type<tc>, window_params = [{transform_indices = @transform_0, window_bounds = array<i64: 1024, 128>}, {transform_indices = @transform_1, window_bounds = array<i64: 2>}, {transform_indices = @transform_2, window_bounds = array<i64: 1024, 128>}]} {
    %c0 = arith.constant 0 : index
    %0 = memref.load %arg2[%c0] : memref<2xf32, #tpu.memory_space<smem>>
    %c1 = arith.constant 1 : index
    %1 = memref.load %arg2[%c1] : memref<2xf32, #tpu.memory_space<smem>>
    %c0_0 = arith.constant 0 : index
    %c0_1 = arith.constant 0 : index
    %2 = vector.load %arg1[%c0_0, %c0_1] : memref<1024x128xf32, #tpu.memory_space<vmem>>, vector<1024x128xf32>
    %3 = vector.broadcast %0 : f32 to vector<1024x128xf32>
    %4 = arith.mulf %2, %3 : vector<1024x128xf32>
    %5 = vector.broadcast %1 : f32 to vector<1024x128xf32>
    %6 = arith.addf %4, %5 : vector<1024x128xf32>
    %cst = arith.constant 5.000000e-01 : f32
    %7 = vector.broadcast %cst : f32 to vector<1024x128xf32>
    %8 = arith.mulf %7, %6 : vector<1024x128xf32>
    %9 = math.tanh %8 : vector<1024x128xf32>
    %cst_2 = arith.constant 5.000000e-01 : f32
    %10 = vector.broadcast %cst_2 : f32 to vector<1024x128xf32>
    %11 = arith.mulf %10, %9 : vector<1024x128xf32>
    %cst_3 = arith.constant 5.000000e-01 : f32
    %12 = vector.broadcast %cst_3 : f32 to vector<1024x128xf32>
    %13 = arith.addf %11, %12 : vector<1024x128xf32>
    %c0_4 = arith.constant 0 : index
    %c0_5 = arith.constant 0 : index
    %14 = vector.load %arg3[%c0_4, %c0_5] : memref<1024x128xf32, #tpu.memory_space<vmem>>, vector<1024x128xf32>
    tpu.vector_store %arg3[%c0_4, %c0_5], %13 {strides = array<i32>} : memref<1024x128xf32, #tpu.memory_space<vmem>>, vector<1024x128xf32>,
    return
  }
  func.func @transform_0(%arg0: i32) -> (i32, i32) {
    %c0_i32 = arith.constant 0 : i32
    %c0_i32_0 = arith.constant 0 : i32
    return %arg0, %c0_i32 : i32, i32
  }
  func.func @transform_1(%arg0: i32) -> i32 {
    %c0_i32 = arith.constant 0 : i32
    %c0_i32_0 = arith.constant 0 : i32
    return %c0_i32 : i32
  }
  func.func @transform_2(%arg0: i32) -> (i32, i32) {
    %c0_i32 = arith.constant 0 : i32
    %c0_i32_0 = arith.constant 0 : i32
    return %arg0, %c0_i32 : i32, i32
  }
}

</mosaic_0001>

<llo_original>
// kernel: tpu_custom_call.1
$region0: #{tpu_custom_call.1}
  #allocation0 [shape = 'u32[]', space=smem, size = 0x4, offset = 0x4, fixed_abs, tag = 'smem constant byte address 0x4 - core index']
  #allocation1 [shape = 'u32[144,128]{1,0:T(1,128)}', space=vmem, size = 0x12000, scoped, tag = 'internal scratch']
  %s0 = inlined_call_operand.hbm [shape: f32[8192,128], index: 0, kind: input, shape index: {}]
  %s1 = inlined_call_operand.hbm [shape: f32[2], index: 1, kind: input, shape index: {}]
  %s2 = inlined_call_operand.hbm [shape: f32[8192,128], index: 2, kind: output, shape index: {}]
  %s3 = sld [smem:[#allocation0]]
  $region49: #{tpu_custom_call.1} parent=0
    _
  %s5 = ssub.s32 1, %s3
  %s6 = scalar_select 0, %s5, %s3
  $region1: #{tpu_custom_call.1} parent=0
    #allocation2 [shape = 'u8[1048576]{0}', space=vmem, size = 0x100000, scoped, tag = 'input window, operand 0']
    #allocation3 [shape = 's32[2]{0}', space=sflag, size = 0x8, scoped, tag = 'scoped memory for tpu_custom_call.1']
    #allocation4 [shape = 's32[2]{0}', space=sflag, size = 0x8, scoped, tag = 'scoped memory for tpu_custom_call.1']
    #allocation5 [shape = 's32[2]{0}', space=sflag, size = 0x8, scoped, tag = 'scoped memory for tpu_custom_call.1']
    #allocation6 [shape = 'u8[512]{0}', space=smem, size = 0x200, scoped, tag = 'input window, operand 1, single buffered']
    #allocation7 [shape = 'u8[1048576]{0}', space=vmem, size = 0x100000, scoped, tag = 'output window, operand 0']
    %7 = vsyncpa [#allocation3], 0
    %s8 = scalar_lea.sflag [#allocation3], 1
    %9 = vsyncpa %s8, 0
    %10 = vsyncpa [#allocation5], 0
    %11 = vsyncpa [#allocation4], 0
    %s12 = scalar_lea.sflag [#allocation4], 1
    %13 = vsyncpa %s12, 0
    loop: start=0, step=1, limit=10
    $region2: #{tpu_custom_call.1} parent=1 // loop_pre_header
      _
    $region3: #{tpu_custom_call.1} parent=1 // loop_header
      %s15 = sphi 0, %s19
      %p16 = scmp.ge.s32.totalorder %s15, 10
      %s25 = sphi 0, %s27
      %s28 = sphi 0, %s25
      %s29 = sphi 0, %s28
      %s45 = sphi 0, %s29
      %s49 = sphi 0, %s49
      %s51 = sphi 0, %s49
      %s52 = sphi 0, %s51
      %s66 = sphi 0, %s52
      %s72 = sphi 0, %s74
      %s75 = sphi 0, %s72
      %s76 = sphi 0, %s75
      %s92 = sphi 0, %s76
    $region4: #{tpu_custom_call.1} parent=1 // loop_header_branch
      %18 = sbr.rel (%p16) target = $region8
    $region5: #{tpu_custom_call.1} parent=1 // loop_body
      %s20 = ssub.s32 %s15, 1
      %s21 = ssub.s32 %s15, 2
      %s22 = sadd.s32 %s15, 1
      %s23 = ssub.s32 %s15, %s22
      %p24 = scmp.eq.s32.totalorder %s23, 0
      %s26 = sadd.s32 %s25, 1
      %s27 = scalar_select %p24, %s25, %s26
      %p30 = pneg %p24
      %p31 = scmp.eq.s32.totalorder %s15, 7
      %p32 = por %p30, %p31
      %p33 = scmp.ne.s32.totalorder %s25, %s28
      %p34 = scmp.eq.s32.totalorder %s15, 0
      %p35 = por %p33, %p34
      %p36 = scmp.ne.s32.totalorder %s25, %s28
      %p37 = scmp.eq.s32.totalorder %s20, 7
      %p38 = por %p36, %p37
      %p39 = scmp.ne.s32.totalorder %s28, %s29
      %p40 = scmp.eq.s32.totalorder %s20, 0
      %p41 = por %p39, %p40
      %p42 = scmp.ne.s32.totalorder %s28, %s29
      %p43 = scmp.eq.s32.totalorder %s21, 7
      %p44 = por %p42, %p43
      %p46 = scmp.ne.s32.totalorder %s29, %s45
      %p47 = scmp.eq.s32.totalorder %s21, 0
      %p48 = por %p46, %p47
      %s50 = sadd.s32 %s49, 1
      %p53 = scmp.eq.s32.totalorder %s15, 7
      %p54 = scmp.ne.s32.totalorder %s49, %s51
      %p55 = scmp.eq.s32.totalorder %s15, 0
      %p56 = por %p54, %p55
      %p57 = scmp.ne.s32.totalorder %s49, %s51
      %p58 = scmp.eq.s32.totalorder %s20, 7
      %p59 = por %p57, %p58
      %p60 = scmp.ne.s32.totalorder %s51, %s52
      %p61 = scmp.eq.s32.totalorder %s20, 0
      %p62 = por %p60, %p61
      %p63 = scmp.ne.s32.totalorder %s51, %s52
      %p64 = scmp.eq.s32.totalorder %s21, 7
      %p65 = por %p63, %p64
      %p67 = scmp.ne.s32.totalorder %s52, %s66
      %p68 = scmp.eq.s32.totalorder %s21, 0
      %p69 = por %p67, %p68
      %s70 = ssub.s32 %s15, %s22
      %p71 = scmp.eq.s32.totalorder %s70, 0
      %s73 = sadd.s32 %s72, 1
      %s74 = scalar_select %p71, %s72, %s73
      %p77 = pneg %p71
      %p78 = scmp.eq.s32.totalorder %s15, 7
      %p79 = por %p77, %p78
      %p80 = scmp.ne.s32.totalorder %s72, %s75
      %p81 = scmp.eq.s32.totalorder %s15, 0
      %p82 = por %p80, %p81
      %p83 = scmp.ne.s32.totalorder %s72, %s75
      %p84 = scmp.eq.s32.totalorder %s20, 7
      %p85 = por %p83, %p84
      %p86 = scmp.ne.s32.totalorder %s75, %s76
      %p87 = scmp.eq.s32.totalorder %s20, 0
      %p88 = por %p86, %p87
      %p89 = scmp.ne.s32.totalorder %s75, %s76
      %p90 = scmp.eq.s32.totalorder %s21, 7
      %p91 = por %p89, %p90
      %p93 = scmp.ne.s32.totalorder %s76, %s92
      %p94 = scmp.eq.s32.totalorder %s21, 0
      %p95 = por %p93, %p94
      %p96 = scmp.le.s32.totalorder 1, %s15
      %p97 = scmp.lt.s32.totalorder %s15, 9
      %p98 = pnand %p96, %p97
      %p99 = pneg %p98
      // Predicated region
      $region9: #{tpu_custom_call.1} parent=5 // pred_check
        _
      $region10: #{tpu_custom_call.1} parent=5 // pred_check_branch
        %101 = sbr.rel (%p98) target = $region12
      $region11: #{tpu_custom_call.1} parent=5 // pred_region
        %s102 = ssub.s32 %s15, 1
        // Predicated region
        $region13: #{tpu_custom_call.1} parent=11 // pred_check
          %p103 = pneg %p62
        $region14: #{tpu_custom_call.1} parent=11 // pred_check_branch
          %105 = sbr.rel (%p103) target = $region16
        $region15: #{tpu_custom_call.1} parent=11 // pred_region
          %s107 = ssub.s32 16, 16
          %108 = vsyncadd [#allocation5], %s107
          %111 = dma.hbm_to_smem %s1, 16, [#allocation6], [#allocation5]
        $region16: #{tpu_custom_call.1} parent=11 // pred_fallthru
          _
      $region12: #{tpu_custom_call.1} parent=5 // pred_fallthru
        _
      %p112 = scmp.lt.s32.totalorder %s15, 8
      // Predicated region
      $region17: #{tpu_custom_call.1} parent=5 // pred_check
        %p113 = pneg %p112
      $region18: #{tpu_custom_call.1} parent=5 // pred_check_branch
        %115 = sbr.rel (%p113) target = $region20
      $region19: #{tpu_custom_call.1} parent=5 // pred_region
        // Predicated region
        $region21: #{tpu_custom_call.1} parent=19 // pred_check
          %p116 = pneg %p35
        $region22: #{tpu_custom_call.1} parent=19 // pred_check_branch
          %118 = sbr.rel (%p116) target = $region24
        $region23: #{tpu_custom_call.1} parent=19 // pred_region
          %s119 = sand.u32 %s25, 1
          %s120 = scalar_lea.sflag [#allocation3], %s119
          %s121 = sand.u32 %s25, 1
          %s122 = smul.addr %s121, 1024
          %s123 = scalar_lea.vmem [#allocation2], %s122
          %s124 = smul.u32 128, %s15
          %s126 = ssub.s32 16384, 16384
          %127 = vsyncadd %s120, %s126
          %s128 = smul.addr %s124, 128
          %s129 = scalar_lea.hbm %s0, %s128
          %s130 = sshll.u32 %s123, 4
          %s131 = int_to_ptr.vmem [resolvable:$true] %s130
          %136 = dma.hbm_to_vmem [thread:$0]  %s129, 16384, %s131, %s120, 128, 128, 8
        $region24: #{tpu_custom_call.1} parent=19 // pred_fallthru
          _
      $region20: #{tpu_custom_call.1} parent=5 // pred_fallthru
        _
      %p137 = scmp.le.s32.totalorder 1, %s15
      %p138 = scmp.lt.s32.totalorder %s15, 9
      %p139 = pnand %p137, %p138
      %p140 = pneg %p139
      // Predicated region
      $region25: #{tpu_custom_call.1} parent=5 // pred_check
        _
      $region26: #{tpu_custom_call.1} parent=5 // pred_check_branch
        %142 = sbr.rel (%p139) target = $region28
      $region27: #{tpu_custom_call.1} parent=5 // pred_region
        %s143 = ssub.s32 %s15, 1
        %s144 = sand.u32 %s28, 1
        %s145 = scalar_lea.sflag [#allocation3], %s144
        %s146 = sand.u32 %s28, 1
        %s147 = smul.addr %s146, 1024
        %s148 = scalar_lea.vmem [#allocation2], %s147
        // Predicated region
        $region29: #{tpu_custom_call.1} parent=27 // pred_check
          %p149 = pneg %p41
        $region30: #{tpu_custom_call.1} parent=27 // pred_check_branch
          %151 = sbr.rel (%p149) target = $region32
        $region31: #{tpu_custom_call.1} parent=27 // pred_region
          %152 = dma.done %s145, 16384
        $region32: #{tpu_custom_call.1} parent=27 // pred_fallthru
          _
        // Predicated region
        $region33: #{tpu_custom_call.1} parent=27 // pred_check
          %p153 = pneg %p62
        $region34: #{tpu_custom_call.1} parent=27 // pred_check_branch
          %155 = sbr.rel (%p153) target = $region36
        $region35: #{tpu_custom_call.1} parent=27 // pred_region
          %156 = dma.done [#allocation5], 16
        $region36: #{tpu_custom_call.1} parent=27 // pred_fallthru
          _
        %157 = sfence
        %s158 = sand.u32 %s28, 1
        %s159 = scalar_lea.sflag [#allocation3], %s158
        %s160 = sand.u32 %s28, 1
        %s161 = smul.addr %s160, 1024
        %s162 = scalar_lea.vmem [#allocation2], %s161
        %p163 = pneg %p41
        %p164 = pneg %p38
        %p165 = pneg %p62
        %p166 = pneg %p59
        %p167 = pneg %p88
        %p168 = pneg %p85
        %s169 = sand.u32 %s75, 1
        %s170 = scalar_lea.sflag [#allocation4], %s169
        %s171 = sand.u32 %s75, 1
        %s172 = smul.addr %s171, 1024
        %s173 = scalar_lea.vmem [#allocation7], %s172
        %s174 = smul.u32 128, %s20
        %s175 = smul.u32 128, %s20
        %s176 = sld [smem:[#allocation6]]
        %s177 = sld [smem:[#allocation6 + $0x1]]
        %v178 = vld [vmem:[%s148] sm:$0xff]
        %v179 = vld [vmem:[%s148 + $0x8] sm:$0xff]
        %v180 = vld [vmem:[%s148 + $0x10] sm:$0xff]
        %v181 = vld [vmem:[%s148 + $0x18] sm:$0xff]
        %v182 = vld [vmem:[%s148 + $0x20] sm:$0xff]
        %v183 = vld [vmem:[%s148 + $0x28] sm:$0xff]
        %v184 = vld [vmem:[%s148 + $0x30] sm:$0xff]
        %v185 = vld [vmem:[%s148 + $0x38] sm:$0xff]
        %v186 = vld [vmem:[%s148 + $0x40] sm:$0xff]
        %v187 = vld [vmem:[%s148 + $0x48] sm:$0xff]
        %v188 = vld [vmem:[%s148 + $0x50] sm:$0xff]
        %v189 = vld [vmem:[%s148 + $0x58] sm:$0xff]
        %v190 = vld [vmem:[%s148 + $0x60] sm:$0xff]
        %v191 = vld [vmem:[%s148 + $0x68] sm:$0xff]
        %v192 = vld [vmem:[%s148 + $0x70] sm:$0xff]
        %v193 = vld [vmem:[%s148 + $0x78] sm:$0xff]
        %v194 = vld [vmem:[%s148 + $0x80] sm:$0xff]
        %v195 = vld [vmem:[%s148 + $0x88] sm:$0xff]
        %v196 = vld [vmem:[%s148 + $0x90] sm:$0xff]
        %v197 = vld [vmem:[%s148 + $0x98] sm:$0xff]
        %v198 = vld [vmem:[%s148 + $0xa0] sm:$0xff]
        %v199 = vld [vmem:[%s148 + $0xa8] sm:$0xff]
        %v200 = vld [vmem:[%s148 + $0xb0] sm:$0xff]
        %v201 = vld [vmem:[%s148 + $0xb8] sm:$0xff]
        %v202 = vld [vmem:[%s148 + $0xc0] sm:$0xff]
        %v203 = vld [vmem:[%s148 + $0xc8] sm:$0xff]
        %v204 = vld [vmem:[%s148 + $0xd0] sm:$0xff]
        %v205 = vld [vmem:[%s148 + $0xd8] sm:$0xff]
        %v206 = vld [vmem:[%s148 + $0xe0] sm:$0xff]
        %v207 = vld [vmem:[%s148 + $0xe8] sm:$0xff]
        %v208 = vld [vmem:[%s148 + $0xf0] sm:$0xff]
        %v209 = vld [vmem:[%s148 + $0xf8] sm:$0xff]
        %v210 = vld [vmem:[%s148 + $0x100] sm:$0xff]
        %v211 = vld [vmem:[%s148 + $0x108] sm:$0xff]
        %v212 = vld [vmem:[%s148 + $0x110] sm:$0xff]
        %v213 = vld [vmem:[%s148 + $0x118] sm:$0xff]
        %v214 = vld [vmem:[%s148 + $0x120] sm:$0xff]
        %v215 = vld [vmem:[%s148 + $0x128] sm:$0xff]
        %v216 = vld [vmem:[%s148 + $0x130] sm:$0xff]
        %v217 = vld [vmem:[%s148 + $0x138] sm:$0xff]
        %v218 = vld [vmem:[%s148 + $0x140] sm:$0xff]
        %v219 = vld [vmem:[%s148 + $0x148] sm:$0xff]
        %v220 = vld [vmem:[%s148 + $0x150] sm:$0xff]
        %v221 = vld [vmem:[%s148 + $0x158] sm:$0xff]
        %v222 = vld [vmem:[%s148 + $0x160] sm:$0xff]
        %v223 = vld [vmem:[%s148 + $0x168] sm:$0xff]
        %v224 = vld [vmem:[%s148 + $0x170] sm:$0xff]
        %v225 = vld [vmem:[%s148 + $0x178] sm:$0xff]
        %v226 = vld [vmem:[%s148 + $0x180] sm:$0xff]
        %v227 = vld [vmem:[%s148 + $0x188] sm:$0xff]
        %v228 = vld [vmem:[%s148 + $0x190] sm:$0xff]
        %v229 = vld [vmem:[%s148 + $0x198] sm:$0xff]
        %v230 = vld [vmem:[%s148 + $0x1a0] sm:$0xff]
        %v231 = vld [vmem:[%s148 + $0x1a8] sm:$0xff]
        %v232 = vld [vmem:[%s148 + $0x1b0] sm:$0xff]
        %v233 = vld [vmem:[%s148 + $0x1b8] sm:$0xff]
        %v234 = vld [vmem:[%s148 + $0x1c0] sm:$0xff]
        %v235 = vld [vmem:[%s148 + $0x1c8] sm:$0xff]
        %v236 = vld [vmem:[%s148 + $0x1d0] sm:$0xff]
        %v237 = vld [vmem:[%s148 + $0x1d8] sm:$0xff]
        %v238 = vld [vmem:[%s148 + $0x1e0] sm:$0xff]
        %v239 = vld [vmem:[%s148 + $0x1e8] sm:$0xff]
        %v240 = vld [vmem:[%s148 + $0x1f0] sm:$0xff]
        %v241 = vld [vmem:[%s148 + $0x1f8] sm:$0xff]
        %v242 = vld [vmem:[%s148 + $0x200] sm:$0xff]
        %v243 = vld [vmem:[%s148 + $0x208] sm:$0xff]
        %v244 = vld [vmem:[%s148 + $0x210] sm:$0xff]
        %v245 = vld [vmem:[%s148 + $0x218] sm:$0xff]
        %v246 = vld [vmem:[%s148 + $0x220] sm:$0xff]
        %v247 = vld [vmem:[%s148 + $0x228] sm:$0xff]
        %v248 = vld [vmem:[%s148 + $0x230] sm:$0xff]
        %v249 = vld [vmem:[%s148 + $0x238] sm:$0xff]
        %v250 = vld [vmem:[%s148 + $0x240] sm:$0xff]
        %v251 = vld [vmem:[%s148 + $0x248] sm:$0xff]
        %v252 = vld [vmem:[%s148 + $0x250] sm:$0xff]
        %v253 = vld [vmem:[%s148 + $0x258] sm:$0xff]
        %v254 = vld [vmem:[%s148 + $0x260] sm:$0xff]
        %v255 = vld [vmem:[%s148 + $0x268] sm:$0xff]
        %v256 = vld [vmem:[%s148 + $0x270] sm:$0xff]
        %v257 = vld [vmem:[%s148 + $0x278] sm:$0xff]
        %v258 = vld [vmem:[%s148 + $0x280] sm:$0xff]
        %v259 = vld [vmem:[%s148 + $0x288] sm:$0xff]
        %v260 = vld [vmem:[%s148 + $0x290] sm:$0xff]
        %v261 = vld [vmem:[%s148 + $0x298] sm:$0xff]
        %v262 = vld [vmem:[%s148 + $0x2a0] sm:$0xff]
        %v263 = vld [vmem:[%s148 + $0x2a8] sm:$0xff]
        %v264 = vld [vmem:[%s148 + $0x2b0] sm:$0xff]
        %v265 = vld [vmem:[%s148 + $0x2b8] sm:$0xff]
        %v266 = vld [vmem:[%s148 + $0x2c0] sm:$0xff]
        %v267 = vld [vmem:[%s148 + $0x2c8] sm:$0xff]
        %v268 = vld [vmem:[%s148 + $0x2d0] sm:$0xff]
        %v269 = vld [vmem:[%s148 + $0x2d8] sm:$0xff]
        %v270 = vld [vmem:[%s148 + $0x2e0] sm:$0xff]
        %v271 = vld [vmem:[%s148 + $0x2e8] sm:$0xff]
        %v272 = vld [vmem:[%s148 + $0x2f0] sm:$0xff]
        %v273 = vld [vmem:[%s148 + $0x2f8] sm:$0xff]
        %v274 = vld [vmem:[%s148 + $0x300] sm:$0xff]
        %v275 = vld [vmem:[%s148 + $0x308] sm:$0xff]
        %v276 = vld [vmem:[%s148 + $0x310] sm:$0xff]
        %v277 = vld [vmem:[%s148 + $0x318] sm:$0xff]
        %v278 = vld [vmem:[%s148 + $0x320] sm:$0xff]
        %v279 = vld [vmem:[%s148 + $0x328] sm:$0xff]
        %v280 = vld [vmem:[%s148 + $0x330] sm:$0xff]
        %v281 = vld [vmem:[%s148 + $0x338] sm:$0xff]
        %v282 = vld [vmem:[%s148 + $0x340] sm:$0xff]
        %v283 = vld [vmem:[%s148 + $0x348] sm:$0xff]
        %v284 = vld [vmem:[%s148 + $0x350] sm:$0xff]
        %v285 = vld [vmem:[%s148 + $0x358] sm:$0xff]
        %v286 = vld [vmem:[%s148 + $0x360] sm:$0xff]
        %v287 = vld [vmem:[%s148 + $0x368] sm:$0xff]
        %v288 = vld [vmem:[%s148 + $0x370] sm:$0xff]
        %v289 = vld [vmem:[%s148 + $0x378] sm:$0xff]
        %v290 = vld [vmem:[%s148 + $0x380] sm:$0xff]
        %v291 = vld [vmem:[%s148 + $0x388] sm:$0xff]
        %v292 = vld [vmem:[%s148 + $0x390] sm:$0xff]
        %v293 = vld [vmem:[%s148 + $0x398] sm:$0xff]
        %v294 = vld [vmem:[%s148 + $0x3a0] sm:$0xff]
        %v295 = vld [vmem:[%s148 + $0x3a8] sm:$0xff]
        %v296 = vld [vmem:[%s148 + $0x3b0] sm:$0xff]
        %v297 = vld [vmem:[%s148 + $0x3b8] sm:$0xff]
        %v298 = vld [vmem:[%s148 + $0x3c0] sm:$0xff]
        %v299 = vld [vmem:[%s148 + $0x3c8] sm:$0xff]
        %v300 = vld [vmem:[%s148 + $0x3d0] sm:$0xff]
        %v301 = vld [vmem:[%s148 + $0x3d8] sm:$0xff]
        %v302 = vld [vmem:[%s148 + $0x3e0] sm:$0xff]
        %v303 = vld [vmem:[%s148 + $0x3e8] sm:$0xff]
        %v304 = vld [vmem:[%s148 + $0x3f0] sm:$0xff]
        %v305 = vld [vmem:[%s148 + $0x3f8] sm:$0xff]
        %v306 = vstv %s176
        %v307 = vmul.f32 %v178, %v306
        %v308 = vmul.f32 %v179, %v306
        %v309 = vmul.f32 %v180, %v306
        %v310 = vmul.f32 %v181, %v306
        %v311 = vmul.f32 %v182, %v306
        %v312 = vmul.f32 %v183, %v306
        %v313 = vmul.f32 %v184, %v306
        %v314 = vmul.f32 %v185, %v306
        %v315 = vmul.f32 %v186, %v306
        %v316 = vmul.f32 %v187, %v306
        %v317 = vmul.f32 %v188, %v306
        %v318 = vmul.f32 %v189, %v306
        %v319 = vmul.f32 %v190, %v306
        %v320 = vmul.f32 %v191, %v306
        %v321 = vmul.f32 %v192, %v306
        %v322 = vmul.f32 %v193, %v306
        %v323 = vmul.f32 %v194, %v306
        %v324 = vmul.f32 %v195, %v306
        %v325 = vmul.f32 %v196, %v306
        %v326 = vmul.f32 %v197, %v306
        %v327 = vmul.f32 %v198, %v306
        %v328 = vmul.f32 %v199, %v306
        %v329 = vmul.f32 %v200, %v306
        %v330 = vmul.f32 %v201, %v306
        %v331 = vmul.f32 %v202, %v306
        %v332 = vmul.f32 %v203, %v306
        %v333 = vmul.f32 %v204, %v306
        %v334 = vmul.f32 %v205, %v306
        %v335 = vmul.f32 %v206, %v306
        %v336 = vmul.f32 %v207, %v306
        %v337 = vmul.f32 %v208, %v306
        %v338 = vmul.f32 %v209, %v306
        %v339 = vmul.f32 %v210, %v306
        %v340 = vmul.f32 %v211, %v306
        %v341 = vmul.f32 %v212, %v306
        %v342 = vmul.f32 %v213, %v306
        %v343 = vmul.f32 %v214, %v306
        %v344 = vmul.f32 %v215, %v306
        %v345 = vmul.f32 %v216, %v306
        %v346 = vmul.f32 %v217, %v306
        %v347 = vmul.f32 %v218, %v306
        %v348 = vmul.f32 %v219, %v306
        %v349 = vmul.f32 %v220, %v306
        %v350 = vmul.f32 %v221, %v306
        %v351 = vmul.f32 %v222, %v306
        %v352 = vmul.f32 %v223, %v306
        %v353 = vmul.f32 %v224, %v306
        %v354 = vmul.f32 %v225, %v306
        %v355 = vmul.f32 %v226, %v306
        %v356 = vmul.f32 %v227, %v306
        %v357 = vmul.f32 %v228, %v306
        %v358 = vmul.f32 %v229, %v306
        %v359 = vmul.f32 %v230, %v306
        %v360 = vmul.f32 %v231, %v306
        %v361 = vmul.f32 %v232, %v306
        %v362 = vmul.f32 %v233, %v306
        %v363 = vmul.f32 %v234, %v306
        %v364 = vmul.f32 %v235, %v306
        %v365 = vmul.f32 %v236, %v306
        %v366 = vmul.f32 %v237, %v306
        %v367 = vmul.f32 %v238, %v306
        %v368 = vmul.f32 %v239, %v306
        %v369 = vmul.f32 %v240, %v306
        %v370 = vmul.f32 %v241, %v306
        %v371 = vmul.f32 %v242, %v306
        %v372 = vmul.f32 %v243, %v306
        %v373 = vmul.f32 %v244, %v306
        %v374 = vmul.f32 %v245, %v306
        %v375 = vmul.f32 %v246, %v306
        %v376 = vmul.f32 %v247, %v306
        %v377 = vmul.f32 %v248, %v306
        %v378 = vmul.f32 %v249, %v306
        %v379 = vmul.f32 %v250, %v306
        %v380 = vmul.f32 %v251, %v306
        %v381 = vmul.f32 %v252, %v306
        %v382 = vmul.f32 %v253, %v306
        %v383 = vmul.f32 %v254, %v306
        %v384 = vmul.f32 %v255, %v306
        %v385 = vmul.f32 %v256, %v306
        %v386 = vmul.f32 %v257, %v306
        %v387 = vmul.f32 %v258, %v306
        %v388 = vmul.f32 %v259, %v306
        %v389 = vmul.f32 %v260, %v306
        %v390 = vmul.f32 %v261, %v306
        %v391 = vmul.f32 %v262, %v306
        %v392 = vmul.f32 %v263, %v306
        %v393 = vmul.f32 %v264, %v306
        %v394 = vmul.f32 %v265, %v306
        %v395 = vmul.f32 %v266, %v306
        %v396 = vmul.f32 %v267, %v306
        %v397 = vmul.f32 %v268, %v306
        %v398 = vmul.f32 %v269, %v306
        %v399 = vmul.f32 %v270, %v306
        %v400 = vmul.f32 %v271, %v306
        %v401 = vmul.f32 %v272, %v306
        %v402 = vmul.f32 %v273, %v306
        %v403 = vmul.f32 %v274, %v306
        %v404 = vmul.f32 %v275, %v306
        %v405 = vmul.f32 %v276, %v306
        %v406 = vmul.f32 %v277, %v306
        %v407 = vmul.f32 %v278, %v306
        %v408 = vmul.f32 %v279, %v306
        %v409 = vmul.f32 %v280, %v306
        %v410 = vmul.f32 %v281, %v306
        %v411 = vmul.f32 %v282, %v306
        %v412 = vmul.f32 %v283, %v306
        %v413 = vmul.f32 %v284, %v306
        %v414 = vmul.f32 %v285, %v306
        %v415 = vmul.f32 %v286, %v306
        %v416 = vmul.f32 %v287, %v306
        %v417 = vmul.f32 %v288, %v306
        %v418 = vmul.f32 %v289, %v306
        %v419 = vmul.f32 %v290, %v306
        %v420 = vmul.f32 %v291, %v306
        %v421 = vmul.f32 %v292, %v306
        %v422 = vmul.f32 %v293, %v306
        %v423 = vmul.f32 %v294, %v306
        %v424 = vmul.f32 %v295, %v306
        %v425 = vmul.f32 %v296, %v306
        %v426 = vmul.f32 %v297, %v306
        %v427 = vmul.f32 %v298, %v306
        %v428 = vmul.f32 %v299, %v306
        %v429 = vmul.f32 %v300, %v306
        %v430 = vmul.f32 %v301, %v306
        %v431 = vmul.f32 %v302, %v306
        %v432 = vmul.f32 %v303, %v306
        %v433 = vmul.f32 %v304, %v306
        %v434 = vmul.f32 %v305, %v306
        %v435 = vstv %s177
        %v436 = vadd.f32 %v307, %v435
        %v437 = vadd.f32 %v308, %v435
        %v438 = vadd.f32 %v309, %v435
        %v439 = vadd.f32 %v310, %v435
        %v440 = vadd.f32 %v311, %v435
        %v441 = vadd.f32 %v312, %v435
        %v442 = vadd.f32 %v313, %v435
        %v443 = vadd.f32 %v314, %v435
        %v444 = vadd.f32 %v315, %v435
        %v445 = vadd.f32 %v316, %v435
        %v446 = vadd.f32 %v317, %v435
        %v447 = vadd.f32 %v318, %v435
        %v448 = vadd.f32 %v319, %v435
        %v449 = vadd.f32 %v320, %v435
        %v450 = vadd.f32 %v321, %v435
        %v451 = vadd.f32 %v322, %v435
        %v452 = vadd.f32 %v323, %v435
        %v453 = vadd.f32 %v324, %v435
        %v454 = vadd.f32 %v325, %v435
        %v455 = vadd.f32 %v326, %v435
        %v456 = vadd.f32 %v327, %v435
        %v457 = vadd.f32 %v328, %v435
        %v458 = vadd.f32 %v329, %v435
        %v459 = vadd.f32 %v330, %v435
        %v460 = vadd.f32 %v331, %v435
        %v461 = vadd.f32 %v332, %v435
        %v462 = vadd.f32 %v333, %v435
        %v463 = vadd.f32 %v334, %v435
        %v464 = vadd.f32 %v335, %v435
        %v465 = vadd.f32 %v336, %v435
        %v466 = vadd.f32 %v337, %v435
        %v467 = vadd.f32 %v338, %v435
        %v468 = vadd.f32 %v339, %v435
        %v469 = vadd.f32 %v340, %v435
        %v470 = vadd.f32 %v341, %v435
        %v471 = vadd.f32 %v342, %v435
        %v472 = vadd.f32 %v343, %v435
        %v473 = vadd.f32 %v344, %v435
        %v474 = vadd.f32 %v345, %v435
        %v475 = vadd.f32 %v346, %v435
        %v476 = vadd.f32 %v347, %v435
        %v477 = vadd.f32 %v348, %v435
        %v478 = vadd.f32 %v349, %v435
        %v479 = vadd.f32 %v350, %v435
        %v480 = vadd.f32 %v351, %v435
        %v481 = vadd.f32 %v352, %v435
        %v482 = vadd.f32 %v353, %v435
        %v483 = vadd.f32 %v354, %v435
        %v484 = vadd.f32 %v355, %v435
        %v485 = vadd.f32 %v356, %v435
        %v486 = vadd.f32 %v357, %v435
        %v487 = vadd.f32 %v358, %v435
        %v488 = vadd.f32 %v359, %v435
        %v489 = vadd.f32 %v360, %v435
        %v490 = vadd.f32 %v361, %v435
        %v491 = vadd.f32 %v362, %v435
        %v492 = vadd.f32 %v363, %v435
        %v493 = vadd.f32 %v364, %v435
        %v494 = vadd.f32 %v365, %v435
        %v495 = vadd.f32 %v366, %v435
        %v496 = vadd.f32 %v367, %v435
        %v497 = vadd.f32 %v368, %v435
        %v498 = vadd.f32 %v369, %v435
        %v499 = vadd.f32 %v370, %v435
        %v500 = vadd.f32 %v371, %v435
        %v501 = vadd.f32 %v372, %v435
        %v502 = vadd.f32 %v373, %v435
        %v503 = vadd.f32 %v374, %v435
        %v504 = vadd.f32 %v375, %v435
        %v505 = vadd.f32 %v376, %v435
        %v506 = vadd.f32 %v377, %v435
        %v507 = vadd.f32 %v378, %v435
        %v508 = vadd.f32 %v379, %v435
        %v509 = vadd.f32 %v380, %v435
        %v510 = vadd.f32 %v381, %v435
        %v511 = vadd.f32 %v382, %v435
        %v512 = vadd.f32 %v383, %v435
        %v513 = vadd.f32 %v384, %v435
        %v514 = vadd.f32 %v385, %v435
        %v515 = vadd.f32 %v386, %v435
        %v516 = vadd.f32 %v387, %v435
        %v517 = vadd.f32 %v388, %v435
        %v518 = vadd.f32 %v389, %v435
        %v519 = vadd.f32 %v390, %v435
        %v520 = vadd.f32 %v391, %v435
        %v521 = vadd.f32 %v392, %v435
        %v522 = vadd.f32 %v393, %v435
        %v523 = vadd.f32 %v394, %v435
        %v524 = vadd.f32 %v395, %v435
        %v525 = vadd.f32 %v396, %v435
        %v526 = vadd.f32 %v397, %v435
        %v527 = vadd.f32 %v398, %v435
        %v528 = vadd.f32 %v399, %v435
        %v529 = vadd.f32 %v400, %v435
        %v530 = vadd.f32 %v401, %v435
        %v531 = vadd.f32 %v402, %v435
        %v532 = vadd.f32 %v403, %v435
        %v533 = vadd.f32 %v404, %v435
        %v534 = vadd.f32 %v405, %v435
        %v535 = vadd.f32 %v406, %v435
        %v536 = vadd.f32 %v407, %v435
        %v537 = vadd.f32 %v408, %v435
        %v538 = vadd.f32 %v409, %v435
        %v539 = vadd.f32 %v410, %v435
        %v540 = vadd.f32 %v411, %v435
        %v541 = vadd.f32 %v412, %v435
        %v542 = vadd.f32 %v413, %v435
        %v543 = vadd.f32 %v414, %v435
        %v544 = vadd.f32 %v415, %v435
        %v545 = vadd.f32 %v416, %v435
        %v546 = vadd.f32 %v417, %v435
        %v547 = vadd.f32 %v418, %v435
        %v548 = vadd.f32 %v419, %v435
        %v549 = vadd.f32 %v420, %v435
        %v550 = vadd.f32 %v421, %v435
        %v551 = vadd.f32 %v422, %v435
        %v552 = vadd.f32 %v423, %v435
        %v553 = vadd.f32 %v424, %v435
        %v554 = vadd.f32 %v425, %v435
        %v555 = vadd.f32 %v426, %v435
        %v556 = vadd.f32 %v427, %v435
        %v557 = vadd.f32 %v428, %v435
        %v558 = vadd.f32 %v429, %v435
        %v559 = vadd.f32 %v430, %v435
        %v560 = vadd.f32 %v431, %v435
        %v561 = vadd.f32 %v432, %v435
        %v562 = vadd.f32 %v433, %v435
        %v563 = vadd.f32 %v434, %v435
        %v564 = vmul.f32 %v436, 0.5
        %v565 = vmul.f32 %v437, 0.5
        %v566 = vmul.f32 %v438, 0.5
        %v567 = vmul.f32 %v439, 0.5
        %v568 = vmul.f32 %v440, 0.5
        %v569 = vmul.f32 %v441, 0.5
        %v570 = vmul.f32 %v442, 0.5
        %v571 = vmul.f32 %v443, 0.5
        %v572 = vmul.f32 %v444, 0.5
        %v573 = vmul.f32 %v445, 0.5
        %v574 = vmul.f32 %v446, 0.5
        %v575 = vmul.f32 %v447, 0.5
        %v576 = vmul.f32 %v448, 0.5
        %v577 = vmul.f32 %v449, 0.5
        %v578 = vmul.f32 %v450, 0.5
        %v579 = vmul.f32 %v451, 0.5
        %v580 = vmul.f32 %v452, 0.5
        %v581 = vmul.f32 %v453, 0.5
        %v582 = vmul.f32 %v454, 0.5
        %v583 = vmul.f32 %v455, 0.5
        %v584 = vmul.f32 %v456, 0.5
        %v585 = vmul.f32 %v457, 0.5
        %v586 = vmul.f32 %v458, 0.5
        %v587 = vmul.f32 %v459, 0.5
        %v588 = vmul.f32 %v460, 0.5
        %v589 = vmul.f32 %v461, 0.5
        %v590 = vmul.f32 %v462, 0.5
        %v591 = vmul.f32 %v463, 0.5
        %v592 = vmul.f32 %v464, 0.5
        %v593 = vmul.f32 %v465, 0.5
        %v594 = vmul.f32 %v466, 0.5
        %v595 = vmul.f32 %v467, 0.5
        %v596 = vmul.f32 %v468, 0.5
        %v597 = vmul.f32 %v469, 0.5
        %v598 = vmul.f32 %v470, 0.5
        %v599 = vmul.f32 %v471, 0.5
        %v600 = vmul.f32 %v472, 0.5
        %v601 = vmul.f32 %v473, 0.5
        %v602 = vmul.f32 %v474, 0.5
        %v603 = vmul.f32 %v475, 0.5
        %v604 = vmul.f32 %v476, 0.5
        %v605 = vmul.f32 %v477, 0.5
        %v606 = vmul.f32 %v478, 0.5
        %v607 = vmul.f32 %v479, 0.5
        %v608 = vmul.f32 %v480, 0.5
        %v609 = vmul.f32 %v481, 0.5
        %v610 = vmul.f32 %v482, 0.5
        %v611 = vmul.f32 %v483, 0.5
        %v612 = vmul.f32 %v484, 0.5
        %v613 = vmul.f32 %v485, 0.5
        %v614 = vmul.f32 %v486, 0.5
        %v615 = vmul.f32 %v487, 0.5
        %v616 = vmul.f32 %v488, 0.5
        %v617 = vmul.f32 %v489, 0.5
        %v618 = vmul.f32 %v490, 0.5
        %v619 = vmul.f32 %v491, 0.5
        %v620 = vmul.f32 %v492, 0.5
        %v621 = vmul.f32 %v493, 0.5
        %v622 = vmul.f32 %v494, 0.5
        %v623 = vmul.f32 %v495, 0.5
        %v624 = vmul.f32 %v496, 0.5
        %v625 = vmul.f32 %v497, 0.5
        %v626 = vmul.f32 %v498, 0.5
        %v627 = vmul.f32 %v499, 0.5
        %v628 = vmul.f32 %v500, 0.5
        %v629 = vmul.f32 %v501, 0.5
        %v630 = vmul.f32 %v502, 0.5
        %v631 = vmul.f32 %v503, 0.5
        %v632 = vmul.f32 %v504, 0.5
        %v633 = vmul.f32 %v505, 0.5
        %v634 = vmul.f32 %v506, 0.5
        %v635 = vmul.f32 %v507, 0.5
        %v636 = vmul.f32 %v508, 0.5
        %v637 = vmul.f32 %v509, 0.5
        %v638 = vmul.f32 %v510, 0.5
        %v639 = vmul.f32 %v511, 0.5
        %v640 = vmul.f32 %v512, 0.5
        %v641 = vmul.f32 %v513, 0.5
        %v642 = vmul.f32 %v514, 0.5
        %v643 = vmul.f32 %v515, 0.5
        %v644 = vmul.f32 %v516, 0.5
        %v645 = vmul.f32 %v517, 0.5
        %v646 = vmul.f32 %v518, 0.5
        %v647 = vmul.f32 %v519, 0.5
        %v648 = vmul.f32 %v520, 0.5
        %v649 = vmul.f32 %v521, 0.5
        %v650 = vmul.f32 %v522, 0.5
        %v651 = vmul.f32 %v523, 0.5
        %v652 = vmul.f32 %v524, 0.5
        %v653 = vmul.f32 %v525, 0.5
        %v654 = vmul.f32 %v526, 0.5
        %v655 = vmul.f32 %v527, 0.5
        %v656 = vmul.f32 %v528, 0.5
        %v657 = vmul.f32 %v529, 0.5
        %v658 = vmul.f32 %v530, 0.5
        %v659 = vmul.f32 %v531, 0.5
        %v660 = vmul.f32 %v532, 0.5
        %v661 = vmul.f32 %v533, 0.5
        %v662 = vmul.f32 %v534, 0.5
        %v663 = vmul.f32 %v535, 0.5
        %v664 = vmul.f32 %v536, 0.5
        %v665 = vmul.f32 %v537, 0.5
        %v666 = vmul.f32 %v538, 0.5
        %v667 = vmul.f32 %v539, 0.5
        %v668 = vmul.f32 %v540, 0.5
        %v669 = vmul.f32 %v541, 0.5
        %v670 = vmul.f32 %v542, 0.5
        %v671 = vmul.f32 %v543, 0.5
        %v672 = vmul.f32 %v544, 0.5
        %v673 = vmul.f32 %v545, 0.5
        %v674 = vmul.f32 %v546, 0.5
        %v675 = vmul.f32 %v547, 0.5
        %v676 = vmul.f32 %v548, 0.5
        %v677 = vmul.f32 %v549, 0.5
        %v678 = vmul.f32 %v550, 0.5
        %v679 = vmul.f32 %v551, 0.5
        %v680 = vmul.f32 %v552, 0.5
        %v681 = vmul.f32 %v553, 0.5
        %v682 = vmul.f32 %v554, 0.5
        %v683 = vmul.f32 %v555, 0.5
        %v684 = vmul.f32 %v556, 0.5
        %v685 = vmul.f32 %v557, 0.5
        %v686 = vmul.f32 %v558, 0.5
        %v687 = vmul.f32 %v559, 0.5
        %v688 = vmul.f32 %v560, 0.5
        %v689 = vmul.f32 %v561, 0.5
        %v690 = vmul.f32 %v562, 0.5
        %v691 = vmul.f32 %v563, 0.5
        %v692 = vtanh.pop %v564
        %v693 = vtanh.pop %v565
        %v694 = vtanh.pop %v566
        %v695 = vtanh.pop %v567
        %v696 = vtanh.pop %v568
        %v697 = vtanh.pop %v569
        %v698 = vtanh.pop %v570
        %v699 = vtanh.pop %v571
        %v700 = vtanh.pop %v572
        %v701 = vtanh.pop %v573
        %v702 = vtanh.pop %v574
        %v703 = vtanh.pop %v575
        %v704 = vtanh.pop %v576
        %v705 = vtanh.pop %v577
        %v706 = vtanh.pop %v578
        %v707 = vtanh.pop %v579
        %v708 = vtanh.pop %v580
        %v709 = vtanh.pop %v581
        %v710 = vtanh.pop %v582
        %v711 = vtanh.pop %v583
        %v712 = vtanh.pop %v584
        %v713 = vtanh.pop %v585
        %v714 = vtanh.pop %v586
        %v715 = vtanh.pop %v587
        %v716 = vtanh.pop %v588
        %v717 = vtanh.pop %v589
        %v718 = vtanh.pop %v590
        %v719 = vtanh.pop %v591
        %v720 = vtanh.pop %v592
        %v721 = vtanh.pop %v593
        %v722 = vtanh.pop %v594
        %v723 = vtanh.pop %v595
        %v724 = vtanh.pop %v596
        %v725 = vtanh.pop %v597
        %v726 = vtanh.pop %v598
        %v727 = vtanh.pop %v599
        %v728 = vtanh.pop %v600
        %v729 = vtanh.pop %v601
        %v730 = vtanh.pop %v602
        %v731 = vtanh.pop %v603
        %v732 = vtanh.pop %v604
        %v733 = vtanh.pop %v605
        %v734 = vtanh.pop %v606
        %v735 = vtanh.pop %v607
        %v736 = vtanh.pop %v608
        %v737 = vtanh.pop %v609
        %v738 = vtanh.pop %v610
        %v739 = vtanh.pop %v611
        %v740 = vtanh.pop %v612
        %v741 = vtanh.pop %v613
        %v742 = vtanh.pop %v614
        %v743 = vtanh.pop %v615
        %v744 = vtanh.pop %v616
        %v745 = vtanh.pop %v617
        %v746 = vtanh.pop %v618
        %v747 = vtanh.pop %v619
        %v748 = vtanh.pop %v620
        %v749 = vtanh.pop %v621
        %v750 = vtanh.pop %v622
        %v751 = vtanh.pop %v623
        %v752 = vtanh.pop %v624
        %v753 = vtanh.pop %v625
        %v754 = vtanh.pop %v626
        %v755 = vtanh.pop %v627
        %v756 = vtanh.pop %v628
        %v757 = vtanh.pop %v629
        %v758 = vtanh.pop %v630
        %v759 = vtanh.pop %v631
        %v760 = vtanh.pop %v632
        %v761 = vtanh.pop %v633
        %v762 = vtanh.pop %v634
        %v763 = vtanh.pop %v635
        %v764 = vtanh.pop %v636
        %v765 = vtanh.pop %v637
        %v766 = vtanh.pop %v638
        %v767 = vtanh.pop %v639
        %v768 = vtanh.pop %v640
        %v769 = vtanh.pop %v641
        %v770 = vtanh.pop %v642
        %v771 = vtanh.pop %v643
        %v772 = vtanh.pop %v644
        %v773 = vtanh.pop %v645
        %v774 = vtanh.pop %v646
        %v775 = vtanh.pop %v647
        %v776 = vtanh.pop %v648
        %v777 = vtanh.pop %v649
        %v778 = vtanh.pop %v650
        %v779 = vtanh.pop %v651
        %v780 = vtanh.pop %v652
        %v781 = vtanh.pop %v653
        %v782 = vtanh.pop %v654
        %v783 = vtanh.pop %v655
        %v784 = vtanh.pop %v656
        %v785 = vtanh.pop %v657
        %v786 = vtanh.pop %v658
        %v787 = vtanh.pop %v659
        %v788 = vtanh.pop %v660
        %v789 = vtanh.pop %v661
        %v790 = vtanh.pop %v662
        %v791 = vtanh.pop %v663
        %v792 = vtanh.pop %v664
        %v793 = vtanh.pop %v665
        %v794 = vtanh.pop %v666
        %v795 = vtanh.pop %v667
        %v796 = vtanh.pop %v668
        %v797 = vtanh.pop %v669
        %v798 = vtanh.pop %v670
        %v799 = vtanh.pop %v671
        %v800 = vtanh.pop %v672
        %v801 = vtanh.pop %v673
        %v802 = vtanh.pop %v674
        %v803 = vtanh.pop %v675
        %v804 = vtanh.pop %v676
        %v805 = vtanh.pop %v677
        %v806 = vtanh.pop %v678
        %v807 = vtanh.pop %v679
        %v808 = vtanh.pop %v680
        %v809 = vtanh.pop %v681
        %v810 = vtanh.pop %v682
        %v811 = vtanh.pop %v683
        %v812 = vtanh.pop %v684
        %v813 = vtanh.pop %v685
        %v814 = vtanh.pop %v686
        %v815 = vtanh.pop %v687
        %v816 = vtanh.pop %v688
        %v817 = vtanh.pop %v689
        %v818 = vtanh.pop %v690
        %v819 = vtanh.pop %v691
        %v820 = vmul.f32 %v692, 0.5
        %v821 = vmul.f32 %v693, 0.5
        %v822 = vmul.f32 %v694, 0.5
        %v823 = vmul.f32 %v695, 0.5
        %v824 = vmul.f32 %v696, 0.5
        %v825 = vmul.f32 %v697, 0.5
        %v826 = vmul.f32 %v698, 0.5
        %v827 = vmul.f32 %v699, 0.5
        %v828 = vmul.f32 %v700, 0.5
        %v829 = vmul.f32 %v701, 0.5
        %v830 = vmul.f32 %v702, 0.5
        %v831 = vmul.f32 %v703, 0.5
        %v832 = vmul.f32 %v704, 0.5
        %v833 = vmul.f32 %v705, 0.5
        %v834 = vmul.f32 %v706, 0.5
        %v835 = vmul.f32 %v707, 0.5
        %v836 = vmul.f32 %v708, 0.5
        %v837 = vmul.f32 %v709, 0.5
        %v838 = vmul.f32 %v710, 0.5
        %v839 = vmul.f32 %v711, 0.5
        %v840 = vmul.f32 %v712, 0.5
        %v841 = vmul.f32 %v713, 0.5
        %v842 = vmul.f32 %v714, 0.5
        %v843 = vmul.f32 %v715, 0.5
        %v844 = vmul.f32 %v716, 0.5
        %v845 = vmul.f32 %v717, 0.5
        %v846 = vmul.f32 %v718, 0.5
        %v847 = vmul.f32 %v719, 0.5
        %v848 = vmul.f32 %v720, 0.5
        %v849 = vmul.f32 %v721, 0.5
        %v850 = vmul.f32 %v722, 0.5
        %v851 = vmul.f32 %v723, 0.5
        %v852 = vmul.f32 %v724, 0.5
        %v853 = vmul.f32 %v725, 0.5
        %v854 = vmul.f32 %v726, 0.5
        %v855 = vmul.f32 %v727, 0.5
        %v856 = vmul.f32 %v728, 0.5
        %v857 = vmul.f32 %v729, 0.5
        %v858 = vmul.f32 %v730, 0.5
        %v859 = vmul.f32 %v731, 0.5
        %v860 = vmul.f32 %v732, 0.5
        %v861 = vmul.f32 %v733, 0.5
        %v862 = vmul.f32 %v734, 0.5
        %v863 = vmul.f32 %v735, 0.5
        %v864 = vmul.f32 %v736, 0.5
        %v865 = vmul.f32 %v737, 0.5
        %v866 = vmul.f32 %v738, 0.5
        %v867 = vmul.f32 %v739, 0.5
        %v868 = vmul.f32 %v740, 0.5
        %v869 = vmul.f32 %v741, 0.5
        %v870 = vmul.f32 %v742, 0.5
        %v871 = vmul.f32 %v743, 0.5
        %v872 = vmul.f32 %v744, 0.5
        %v873 = vmul.f32 %v745, 0.5
        %v874 = vmul.f32 %v746, 0.5
        %v875 = vmul.f32 %v747, 0.5
        %v876 = vmul.f32 %v748, 0.5
        %v877 = vmul.f32 %v749, 0.5
        %v878 = vmul.f32 %v750, 0.5
        %v879 = vmul.f32 %v751, 0.5
        %v880 = vmul.f32 %v752, 0.5
        %v881 = vmul.f32 %v753, 0.5
        %v882 = vmul.f32 %v754, 0.5
        %v883 = vmul.f32 %v755, 0.5
        %v884 = vmul.f32 %v756, 0.5
        %v885 = vmul.f32 %v757, 0.5
        %v886 = vmul.f32 %v758, 0.5
        %v887 = vmul.f32 %v759, 0.5
        %v888 = vmul.f32 %v760, 0.5
        %v889 = vmul.f32 %v761, 0.5
        %v890 = vmul.f32 %v762, 0.5
        %v891 = vmul.f32 %v763, 0.5
        %v892 = vmul.f32 %v764, 0.5
        %v893 = vmul.f32 %v765, 0.5
        %v894 = vmul.f32 %v766, 0.5
        %v895 = vmul.f32 %v767, 0.5
        %v896 = vmul.f32 %v768, 0.5
        %v897 = vmul.f32 %v769, 0.5
        %v898 = vmul.f32 %v770, 0.5
        %v899 = vmul.f32 %v771, 0.5
        %v900 = vmul.f32 %v772, 0.5
        %v901 = vmul.f32 %v773, 0.5
        %v902 = vmul.f32 %v774, 0.5
        %v903 = vmul.f32 %v775, 0.5
        %v904 = vmul.f32 %v776, 0.5
        %v905 = vmul.f32 %v777, 0.5
        %v906 = vmul.f32 %v778, 0.5
        %v907 = vmul.f32 %v779, 0.5
        %v908 = vmul.f32 %v780, 0.5
        %v909 = vmul.f32 %v781, 0.5
        %v910 = vmul.f32 %v782, 0.5
        %v911 = vmul.f32 %v783, 0.5
        %v912 = vmul.f32 %v784, 0.5
        %v913 = vmul.f32 %v785, 0.5
        %v914 = vmul.f32 %v786, 0.5
        %v915 = vmul.f32 %v787, 0.5
        %v916 = vmul.f32 %v788, 0.5
        %v917 = vmul.f32 %v789, 0.5
        %v918 = vmul.f32 %v790, 0.5
        %v919 = vmul.f32 %v791, 0.5
        %v920 = vmul.f32 %v792, 0.5
        %v921 = vmul.f32 %v793, 0.5
        %v922 = vmul.f32 %v794, 0.5
        %v923 = vmul.f32 %v795, 0.5
        %v924 = vmul.f32 %v796, 0.5
        %v925 = vmul.f32 %v797, 0.5
        %v926 = vmul.f32 %v798, 0.5
        %v927 = vmul.f32 %v799, 0.5
        %v928 = vmul.f32 %v800, 0.5
        %v929 = vmul.f32 %v801, 0.5
        %v930 = vmul.f32 %v802, 0.5
        %v931 = vmul.f32 %v803, 0.5
        %v932 = vmul.f32 %v804, 0.5
        %v933 = vmul.f32 %v805, 0.5
        %v934 = vmul.f32 %v806, 0.5
        %v935 = vmul.f32 %v807, 0.5
        %v936 = vmul.f32 %v808, 0.5
        %v937 = vmul.f32 %v809, 0.5
        %v938 = vmul.f32 %v810, 0.5
        %v939 = vmul.f32 %v811, 0.5
        %v940 = vmul.f32 %v812, 0.5
        %v941 = vmul.f32 %v813, 0.5
        %v942 = vmul.f32 %v814, 0.5
        %v943 = vmul.f32 %v815, 0.5
        %v944 = vmul.f32 %v816, 0.5
        %v945 = vmul.f32 %v817, 0.5
        %v946 = vmul.f32 %v818, 0.5
        %v947 = vmul.f32 %v819, 0.5
        %v948 = vadd.f32 %v820, 0.5
        %v949 = vadd.f32 %v821, 0.5
        %v950 = vadd.f32 %v822, 0.5
        %v951 = vadd.f32 %v823, 0.5
        %v952 = vadd.f32 %v824, 0.5
        %v953 = vadd.f32 %v825, 0.5
        %v954 = vadd.f32 %v826, 0.5
        %v955 = vadd.f32 %v827, 0.5
        %v956 = vadd.f32 %v828, 0.5
        %v957 = vadd.f32 %v829, 0.5
        %v958 = vadd.f32 %v830, 0.5
        %v959 = vadd.f32 %v831, 0.5
        %v960 = vadd.f32 %v832, 0.5
        %v961 = vadd.f32 %v833, 0.5
        %v962 = vadd.f32 %v834, 0.5
        %v963 = vadd.f32 %v835, 0.5
        %v964 = vadd.f32 %v836, 0.5
        %v965 = vadd.f32 %v837, 0.5
        %v966 = vadd.f32 %v838, 0.5
        %v967 = vadd.f32 %v839, 0.5
        %v968 = vadd.f32 %v840, 0.5
        %v969 = vadd.f32 %v841, 0.5
        %v970 = vadd.f32 %v842, 0.5
        %v971 = vadd.f32 %v843, 0.5
        %v972 = vadd.f32 %v844, 0.5
        %v973 = vadd.f32 %v845, 0.5
        %v974 = vadd.f32 %v846, 0.5
        %v975 = vadd.f32 %v847, 0.5
        %v976 = vadd.f32 %v848, 0.5
        %v977 = vadd.f32 %v849, 0.5
        %v978 = vadd.f32 %v850, 0.5
        %v979 = vadd.f32 %v851, 0.5
        %v980 = vadd.f32 %v852, 0.5
        %v981 = vadd.f32 %v853, 0.5
        %v982 = vadd.f32 %v854, 0.5
        %v983 = vadd.f32 %v855, 0.5
        %v984 = vadd.f32 %v856, 0.5
        %v985 = vadd.f32 %v857, 0.5
        %v986 = vadd.f32 %v858, 0.5
        %v987 = vadd.f32 %v859, 0.5
        %v988 = vadd.f32 %v860, 0.5
        %v989 = vadd.f32 %v861, 0.5
        %v990 = vadd.f32 %v862, 0.5
        %v991 = vadd.f32 %v863, 0.5
        %v992 = vadd.f32 %v864, 0.5
        %v993 = vadd.f32 %v865, 0.5
        %v994 = vadd.f32 %v866, 0.5
        %v995 = vadd.f32 %v867, 0.5
        %v996 = vadd.f32 %v868, 0.5
        %v997 = vadd.f32 %v869, 0.5
        %v998 = vadd.f32 %v870, 0.5
        %v999 = vadd.f32 %v871, 0.5
        %v1000 = vadd.f32 %v872, 0.5
        %v1001 = vadd.f32 %v873, 0.5
        %v1002 = vadd.f32 %v874, 0.5
        %v1003 = vadd.f32 %v875, 0.5
        %v1004 = vadd.f32 %v876, 0.5
        %v1005 = vadd.f32 %v877, 0.5
        %v1006 = vadd.f32 %v878, 0.5
        %v1007 = vadd.f32 %v879, 0.5
        %v1008 = vadd.f32 %v880, 0.5
        %v1009 = vadd.f32 %v881, 0.5
        %v1010 = vadd.f32 %v882, 0.5
        %v1011 = vadd.f32 %v883, 0.5
        %v1012 = vadd.f32 %v884, 0.5
        %v1013 = vadd.f32 %v885, 0.5
        %v1014 = vadd.f32 %v886, 0.5
        %v1015 = vadd.f32 %v887, 0.5
        %v1016 = vadd.f32 %v888, 0.5
        %v1017 = vadd.f32 %v889, 0.5
        %v1018 = vadd.f32 %v890, 0.5
        %v1019 = vadd.f32 %v891, 0.5
        %v1020 = vadd.f32 %v892, 0.5
        %v1021 = vadd.f32 %v893, 0.5
        %v1022 = vadd.f32 %v894, 0.5
        %v1023 = vadd.f32 %v895, 0.5
        %v1024 = vadd.f32 %v896, 0.5
        %v1025 = vadd.f32 %v897, 0.5
        %v1026 = vadd.f32 %v898, 0.5
        %v1027 = vadd.f32 %v899, 0.5
        %v1028 = vadd.f32 %v900, 0.5
        %v1029 = vadd.f32 %v901, 0.5
        %v1030 = vadd.f32 %v902, 0.5
        %v1031 = vadd.f32 %v903, 0.5
        %v1032 = vadd.f32 %v904, 0.5
        %v1033 = vadd.f32 %v905, 0.5
        %v1034 = vadd.f32 %v906, 0.5
        %v1035 = vadd.f32 %v907, 0.5
        %v1036 = vadd.f32 %v908, 0.5
        %v1037 = vadd.f32 %v909, 0.5
        %v1038 = vadd.f32 %v910, 0.5
        %v1039 = vadd.f32 %v911, 0.5
        %v1040 = vadd.f32 %v912, 0.5
        %v1041 = vadd.f32 %v913, 0.5
        %v1042 = vadd.f32 %v914, 0.5
        %v1043 = vadd.f32 %v915, 0.5
        %v1044 = vadd.f32 %v916, 0.5
        %v1045 = vadd.f32 %v917, 0.5
        %v1046 = vadd.f32 %v918, 0.5
        %v1047 = vadd.f32 %v919, 0.5
        %v1048 = vadd.f32 %v920, 0.5
        %v1049 = vadd.f32 %v921, 0.5
        %v1050 = vadd.f32 %v922, 0.5
        %v1051 = vadd.f32 %v923, 0.5
        %v1052 = vadd.f32 %v924, 0.5
        %v1053 = vadd.f32 %v925, 0.5
        %v1054 = vadd.f32 %v926, 0.5
        %v1055 = vadd.f32 %v927, 0.5
        %v1056 = vadd.f32 %v928, 0.5
        %v1057 = vadd.f32 %v929, 0.5
        %v1058 = vadd.f32 %v930, 0.5
        %v1059 = vadd.f32 %v931, 0.5
        %v1060 = vadd.f32 %v932, 0.5
        %v1061 = vadd.f32 %v933, 0.5
        %v1062 = vadd.f32 %v934, 0.5
        %v1063 = vadd.f32 %v935, 0.5
        %v1064 = vadd.f32 %v936, 0.5
        %v1065 = vadd.f32 %v937, 0.5
        %v1066 = vadd.f32 %v938, 0.5
        %v1067 = vadd.f32 %v939, 0.5
        %v1068 = vadd.f32 %v940, 0.5
        %v1069 = vadd.f32 %v941, 0.5
        %v1070 = vadd.f32 %v942, 0.5
        %v1071 = vadd.f32 %v943, 0.5
        %v1072 = vadd.f32 %v944, 0.5
        %v1073 = vadd.f32 %v945, 0.5
        %v1074 = vadd.f32 %v946, 0.5
        %v1075 = vadd.f32 %v947, 0.5
        %1076 = vst [vmem:[%s173] sm:$0xff] %v948
        %1077 = vst [vmem:[%s173 + $0x8] sm:$0xff] %v949
        %1078 = vst [vmem:[%s173 + $0x10] sm:$0xff] %v950
        %1079 = vst [vmem:[%s173 + $0x18] sm:$0xff] %v951
        %1080 = vst [vmem:[%s173 + $0x20] sm:$0xff] %v952
        %1081 = vst [vmem:[%s173 + $0x28] sm:$0xff] %v953
        %1082 = vst [vmem:[%s173 + $0x30] sm:$0xff] %v954
        %1083 = vst [vmem:[%s173 + $0x38] sm:$0xff] %v955
        %1084 = vst [vmem:[%s173 + $0x40] sm:$0xff] %v956
        %1085 = vst [vmem:[%s173 + $0x48] sm:$0xff] %v957
        %1086 = vst [vmem:[%s173 + $0x50] sm:$0xff] %v958
        %1087 = vst [vmem:[%s173 + $0x58] sm:$0xff] %v959
        %1088 = vst [vmem:[%s173 + $0x60] sm:$0xff] %v960
        %1089 = vst [vmem:[%s173 + $0x68] sm:$0xff] %v961
        %1090 = vst [vmem:[%s173 + $0x70] sm:$0xff] %v962
        %1091 = vst [vmem:[%s173 + $0x78] sm:$0xff] %v963
        %1092 = vst [vmem:[%s173 + $0x80] sm:$0xff] %v964
        %1093 = vst [vmem:[%s173 + $0x88] sm:$0xff] %v965
        %1094 = vst [vmem:[%s173 + $0x90] sm:$0xff] %v966
        %1095 = vst [vmem:[%s173 + $0x98] sm:$0xff] %v967
        %1096 = vst [vmem:[%s173 + $0xa0] sm:$0xff] %v968
        %1097 = vst [vmem:[%s173 + $0xa8] sm:$0xff] %v969
        %1098 = vst [vmem:[%s173 + $0xb0] sm:$0xff] %v970
        %1099 = vst [vmem:[%s173 + $0xb8] sm:$0xff] %v971
        %1100 = vst [vmem:[%s173 + $0xc0] sm:$0xff] %v972
        %1101 = vst [vmem:[%s173 + $0xc8] sm:$0xff] %v973
        %1102 = vst [vmem:[%s173 + $0xd0] sm:$0xff] %v974
        %1103 = vst [vmem:[%s173 + $0xd8] sm:$0xff] %v975
        %1104 = vst [vmem:[%s173 + $0xe0] sm:$0xff] %v976
        %1105 = vst [vmem:[%s173 + $0xe8] sm:$0xff] %v977
        %1106 = vst [vmem:[%s173 + $0xf0] sm:$0xff] %v978
        %1107 = vst [vmem:[%s173 + $0xf8] sm:$0xff] %v979
        %1108 = vst [vmem:[%s173 + $0x100] sm:$0xff] %v980
        %1109 = vst [vmem:[%s173 + $0x108] sm:$0xff] %v981
        %1110 = vst [vmem:[%s173 + $0x110] sm:$0xff] %v982
        %1111 = vst [vmem:[%s173 + $0x118] sm:$0xff] %v983
        %1112 = vst [vmem:[%s173 + $0x120] sm:$0xff] %v984
        %1113 = vst [vmem:[%s173 + $0x128] sm:$0xff] %v985
        %1114 = vst [vmem:[%s173 + $0x130] sm:$0xff] %v986
        %1115 = vst [vmem:[%s173 + $0x138] sm:$0xff] %v987
        %1116 = vst [vmem:[%s173 + $0x140] sm:$0xff] %v988
        %1117 = vst [vmem:[%s173 + $0x148] sm:$0xff] %v989
        %1118 = vst [vmem:[%s173 + $0x150] sm:$0xff] %v990
        %1119 = vst [vmem:[%s173 + $0x158] sm:$0xff] %v991
        %1120 = vst [vmem:[%s173 + $0x160] sm:$0xff] %v992
        %1121 = vst [vmem:[%s173 + $0x168] sm:$0xff] %v993
        %1122 = vst [vmem:[%s173 + $0x170] sm:$0xff] %v994
        %1123 = vst [vmem:[%s173 + $0x178] sm:$0xff] %v995
        %1124 = vst [vmem:[%s173 + $0x180] sm:$0xff] %v996
        %1125 = vst [vmem:[%s173 + $0x188] sm:$0xff] %v997
        %1126 = vst [vmem:[%s173 + $0x190] sm:$0xff] %v998
        %1127 = vst [vmem:[%s173 + $0x198] sm:$0xff] %v999
        %1128 = vst [vmem:[%s173 + $0x1a0] sm:$0xff] %v1000
        %1129 = vst [vmem:[%s173 + $0x1a8] sm:$0xff] %v1001
        %1130 = vst [vmem:[%s173 + $0x1b0] sm:$0xff] %v1002
        %1131 = vst [vmem:[%s173 + $0x1b8] sm:$0xff] %v1003
        %1132 = vst [vmem:[%s173 + $0x1c0] sm:$0xff] %v1004
        %1133 = vst [vmem:[%s173 + $0x1c8] sm:$0xff] %v1005
        %1134 = vst [vmem:[%s173 + $0x1d0] sm:$0xff] %v1006
        %1135 = vst [vmem:[%s173 + $0x1d8] sm:$0xff] %v1007
        %1136 = vst [vmem:[%s173 + $0x1e0] sm:$0xff] %v1008
        %1137 = vst [vmem:[%s173 + $0x1e8] sm:$0xff] %v1009
        %1138 = vst [vmem:[%s173 + $0x1f0] sm:$0xff] %v1010
        %1139 = vst [vmem:[%s173 + $0x1f8] sm:$0xff] %v1011
        %1140 = vst [vmem:[%s173 + $0x200] sm:$0xff] %v1012
        %1141 = vst [vmem:[%s173 + $0x208] sm:$0xff] %v1013
        %1142 = vst [vmem:[%s173 + $0x210] sm:$0xff] %v1014
        %1143 = vst [vmem:[%s173 + $0x218] sm:$0xff] %v1015
        %1144 = vst [vmem:[%s173 + $0x220] sm:$0xff] %v1016
        %1145 = vst [vmem:[%s173 + $0x228] sm:$0xff] %v1017
        %1146 = vst [vmem:[%s173 + $0x230] sm:$0xff] %v1018
        %1147 = vst [vmem:[%s173 + $0x238] sm:$0xff] %v1019
        %1148 = vst [vmem:[%s173 + $0x240] sm:$0xff] %v1020
        %1149 = vst [vmem:[%s173 + $0x248] sm:$0xff] %v1021
        %1150 = vst [vmem:[%s173 + $0x250] sm:$0xff] %v1022
        %1151 = vst [vmem:[%s173 + $0x258] sm:$0xff] %v1023
        %1152 = vst [vmem:[%s173 + $0x260] sm:$0xff] %v1024
        %1153 = vst [vmem:[%s173 + $0x268] sm:$0xff] %v1025
        %1154 = vst [vmem:[%s173 + $0x270] sm:$0xff] %v1026
        %1155 = vst [vmem:[%s173 + $0x278] sm:$0xff] %v1027
        %1156 = vst [vmem:[%s173 + $0x280] sm:$0xff] %v1028
        %1157 = vst [vmem:[%s173 + $0x288] sm:$0xff] %v1029
        %1158 = vst [vmem:[%s173 + $0x290] sm:$0xff] %v1030
        %1159 = vst [vmem:[%s173 + $0x298] sm:$0xff] %v1031
        %1160 = vst [vmem:[%s173 + $0x2a0] sm:$0xff] %v1032
        %1161 = vst [vmem:[%s173 + $0x2a8] sm:$0xff] %v1033
        %1162 = vst [vmem:[%s173 + $0x2b0] sm:$0xff] %v1034
        %1163 = vst [vmem:[%s173 + $0x2b8] sm:$0xff] %v1035
        %1164 = vst [vmem:[%s173 + $0x2c0] sm:$0xff] %v1036
        %1165 = vst [vmem:[%s173 + $0x2c8] sm:$0xff] %v1037
        %1166 = vst [vmem:[%s173 + $0x2d0] sm:$0xff] %v1038
        %1167 = vst [vmem:[%s173 + $0x2d8] sm:$0xff] %v1039
        %1168 = vst [vmem:[%s173 + $0x2e0] sm:$0xff] %v1040
        %1169 = vst [vmem:[%s173 + $0x2e8] sm:$0xff] %v1041
        %1170 = vst [vmem:[%s173 + $0x2f0] sm:$0xff] %v1042
        %1171 = vst [vmem:[%s173 + $0x2f8] sm:$0xff] %v1043
        %1172 = vst [vmem:[%s173 + $0x300] sm:$0xff] %v1044
        %1173 = vst [vmem:[%s173 + $0x308] sm:$0xff] %v1045
        %1174 = vst [vmem:[%s173 + $0x310] sm:$0xff] %v1046
        %1175 = vst [vmem:[%s173 + $0x318] sm:$0xff] %v1047
        %1176 = vst [vmem:[%s173 + $0x320] sm:$0xff] %v1048
        %1177 = vst [vmem:[%s173 + $0x328] sm:$0xff] %v1049
        %1178 = vst [vmem:[%s173 + $0x330] sm:$0xff] %v1050
        %1179 = vst [vmem:[%s173 + $0x338] sm:$0xff] %v1051
        %1180 = vst [vmem:[%s173 + $0x340] sm:$0xff] %v1052
        %1181 = vst [vmem:[%s173 + $0x348] sm:$0xff] %v1053
        %1182 = vst [vmem:[%s173 + $0x350] sm:$0xff] %v1054
        %1183 = vst [vmem:[%s173 + $0x358] sm:$0xff] %v1055
        %1184 = vst [vmem:[%s173 + $0x360] sm:$0xff] %v1056
        %1185 = vst [vmem:[%s173 + $0x368] sm:$0xff] %v1057
        %1186 = vst [vmem:[%s173 + $0x370] sm:$0xff] %v1058
        %1187 = vst [vmem:[%s173 + $0x378] sm:$0xff] %v1059
        %1188 = vst [vmem:[%s173 + $0x380] sm:$0xff] %v1060
        %1189 = vst [vmem:[%s173 + $0x388] sm:$0xff] %v1061
        %1190 = vst [vmem:[%s173 + $0x390] sm:$0xff] %v1062
        %1191 = vst [vmem:[%s173 + $0x398] sm:$0xff] %v1063
        %1192 = vst [vmem:[%s173 + $0x3a0] sm:$0xff] %v1064
        %1193 = vst [vmem:[%s173 + $0x3a8] sm:$0xff] %v1065
        %1194 = vst [vmem:[%s173 + $0x3b0] sm:$0xff] %v1066
        %1195 = vst [vmem:[%s173 + $0x3b8] sm:$0xff] %v1067
        %1196 = vst [vmem:[%s173 + $0x3c0] sm:$0xff] %v1068
        %1197 = vst [vmem:[%s173 + $0x3c8] sm:$0xff] %v1069
        %1198 = vst [vmem:[%s173 + $0x3d0] sm:$0xff] %v1070
        %1199 = vst [vmem:[%s173 + $0x3d8] sm:$0xff] %v1071
        %1200 = vst [vmem:[%s173 + $0x3e0] sm:$0xff] %v1072
        %1201 = vst [vmem:[%s173 + $0x3e8] sm:$0xff] %v1073
        %1202 = vst [vmem:[%s173 + $0x3f0] sm:$0xff] %v1074
        %1203 = vst [vmem:[%s173 + $0x3f8] sm:$0xff] %v1075
        %s1204 = sand.u32 %s75, 1
        %s1205 = scalar_lea.sflag [#allocation4], %s1204
        %s1206 = sand.u32 %s75, 1
        %s1207 = smul.addr %s1206, 1024
        %s1208 = scalar_lea.vmem [#allocation7], %s1207
        // Predicated region
        $region37: #{tpu_custom_call.1} parent=27 // pred_check
          %p1209 = pneg %p85
        $region38: #{tpu_custom_call.1} parent=27 // pred_check_branch
          %1211 = sbr.rel (%p1209) target = $region40
        $region39: #{tpu_custom_call.1} parent=27 // pred_region
          %s1212 = smul.u32 128, %s20
          %s1214 = ssub.s32 16384, 16384
          %1215 = vsyncadd %s1205, %s1214
          %s1216 = smul.addr %s1212, 128
          %s1217 = scalar_lea.hbm %s2, %s1216
          %s1218 = sshll.u32 %s1208, 4
          %s1219 = int_to_ptr.vmem [resolvable:$true] %s1218
          %1224 = dma.vmem_to_hbm [thread:$0]  %s1219, 16384, %s1217, %s1205, 128, 128, 8
        $region40: #{tpu_custom_call.1} parent=27 // pred_fallthru
          _
      $region28: #{tpu_custom_call.1} parent=5 // pred_fallthru
        _
      %p1225 = scmp.le.s32.totalorder 2, %s15
      // Predicated region
      $region41: #{tpu_custom_call.1} parent=5 // pred_check
        %p1226 = pneg %p1225
      $region42: #{tpu_custom_call.1} parent=5 // pred_check_branch
        %1228 = sbr.rel (%p1226) target = $region44
      $region43: #{tpu_custom_call.1} parent=5 // pred_region
        %s1229 = ssub.s32 %s15, 2
        // Predicated region
        $region45: #{tpu_custom_call.1} parent=43 // pred_check
          %p1230 = pneg %p91
        $region46: #{tpu_custom_call.1} parent=43 // pred_check_branch
          %1232 = sbr.rel (%p1230) target = $region48
        $region47: #{tpu_custom_call.1} parent=43 // pred_region
          %s1233 = sand.u32 %s76, 1
          %s1234 = scalar_lea.sflag [#allocation4], %s1233
          %s1235 = sand.u32 %s76, 1
          %s1236 = smul.addr %s1235, 1024
          %s1237 = scalar_lea.vmem [#allocation7], %s1236
          %1238 = dma.done %s1234, 16384
        $region48: #{tpu_custom_call.1} parent=43 // pred_fallthru
          _
      $region44: #{tpu_custom_call.1} parent=5 // pred_fallthru
        _
    $region6: #{tpu_custom_call.1} parent=1 // loop_footer
      %s19 = sadd.s32 1, %s15
    $region7: #{tpu_custom_call.1} parent=1 // loop_footer_branch
      %14 = sbr.rel target = $region3
    $region8: #{tpu_custom_call.1} parent=1 // loop_exit
      _
    %1239 = vsyncpa [#allocation3], 1
    %s1240 = scalar_lea.sflag [#allocation3], 1
    %1241 = vsyncpa %s1240, 1
    %1242 = vsyncpa [#allocation4], 1
    %s1243 = scalar_lea.sflag [#allocation4], 1
    %1244 = vsyncpa %s1243, 1
    %1245 = vsyncpa [#allocation5], 1
    %s1246 = scalar_lea.sflag [#allocation5], 1
    %1247 = vsyncpa %s1246, 1

</llo_original>
